<compile_context>
chip_gen: v7x
topology: tpu7x:2x2x1
jax: 0.10.0
libtpu: 0.0.40
codegen_flags: <defaults>
</compile_context>

<pallas_src>
import functools

import numpy as np
import jax
import jax.numpy as jnp
from jax.experimental import pallas as pl
from jax.experimental.pallas import tpu as pltpu


# 2x2 stencil weights, identical to the constants in DarcyFlow.__init__.
KVALS = np.array(
    [
        [[-1.0 / 6.0,  2.0 / 3.0], [-1.0 / 3.0, -1.0 / 6.0]],  # kernel1 (c=0)
        [[ 2.0 / 3.0, -1.0 / 6.0], [-1.0 / 6.0, -1.0 / 3.0]],  # kernel2 (c=1)
        [[-1.0 / 6.0, -1.0 / 3.0], [ 2.0 / 3.0, -1.0 / 6.0]],  # kernel3 (c=2)
        [[-1.0 / 3.0, -1.0 / 6.0], [-1.0 / 6.0,  2.0 / 3.0]],  # kernel4 (c=3)
    ],
    dtype=np.float32,
)  # (4, 2, 2); the conv weight is KVALS[None] -> (O=1, I=4, 2, 2)

# Largest dense banded operator we hold in VMEM (f32 bytes).  8 MiB ->
# N*N <= ~1448 -> N <= 38; beyond that the roll-stencil fallback is used.
_MATMUL_S_BUDGET_BYTES = 8 << 20


def _round_up(v, m):
    return ((v + m - 1) // m) * m


@functools.lru_cache(maxsize=1)
def _num_tensorcores():
    """Best-effort TensorCore count of the local chip; defaults to 1.

    Used only to decide whether splitting the batch grid axis can pay off
    (v7x megacore).  On single-TC chips (v5e/v6e) the grid is a serial loop,
    so the safe default keeps a single grid step.
    """
    try:
        info = pltpu.get_tpu_info()
        for name in ("num_cores", "core_count", "num_tensorcores",
                     "tensorcore_count", "num_tensor_cores"):
            v = getattr(info, name, None)
            if isinstance(v, int) and v > 0:
                return v
    except Exception:
        pass
    try:
        v = getattr(jax.devices()[0], "num_cores", None)
        if isinstance(v, int) and v > 0:
            return v
    except Exception:
        pass
    return 1


# ----------------------------------------------------------------------------
# Build-once coefficient construction (pure numpy; depends only on `a`).
# ----------------------------------------------------------------------------
def _stencil_weight_maps_np(a, n):
    """Nine (N*N,) coefficient maps W such that
         out[i, j] = sum_{dr,dc in {-1,0,1}} W[dr, dc][i, j] * x[i+dr, j+dc],
    folding the four a-shifts, the 2x2 conv weights and the zero-border mask.
    """
    a2 = np.asarray(a, np.float32).reshape(n - 1, n - 1)
    a_pad = np.zeros((n, n), np.float32)
    a_pad[: n - 1, : n - 1] = a2

    ri = np.arange(n)
    interior = (ri >= 1) & (ri <= n - 2)
    mask = (interior[:, None] & interior[None, :]).astype(np.float32)

    # A[(p, q)][i, j] = a_pad[i - 1 + p, j - 1 + q]  (wrap is masked out below)
    A = {(p, q): np.roll(a_pad, shift=(1 - p, 1 - q), axis=(0, 1))
         for p in (0, 1) for q in (0, 1)}

    # x-neighbourhood offset used by each (channel, p, q) conv term relative to
    # the padded output position:
    #   c=0: x1 = x[1:, :-1]*a -> (p, q-1)     c=1: x2 = x[1:, 1:]*a -> (p, q)
    #   c=2: x3 = x[:-1, 1:]*a -> (p-1, q)     c=3: x4 = x[:-1, :-1]*a -> (p-1, q-1)
    off = {0: lambda p, q: (p, q - 1),
           1: lambda p, q: (p, q),
           2: lambda p, q: (p - 1, q),
           3: lambda p, q: (p - 1, q - 1)}

    W = np.zeros((3, 3, n, n), np.float32)
    for c in range(4):
        for p in (0, 1):
            for q in (0, 1):
                dr, dc = off[c](p, q)
                W[dr + 1, dc + 1] += float(KVALS[c, p, q]) * A[(p, q)]
    W *= mask  # output border rows/cols are exact zeros (the F.pad)
    return W.reshape(9, n * n)


def _operator_matrix_np(a, n):
    """Dense banded operator S (N*N, N*N) such that  out_flat = x_flat @ S."""
    W = _stencil_weight_maps_np(a, n)
    nn = n * n
    S = np.zeros((nn, nn), np.float32)
    lo = np.arange(nn)
    k = 0
    for dr in (-1, 0, 1):
        for dc in (-1, 0, 1):
            li = lo + dr * n + dc
            valid = (li >= 0) & (li < nn)  # W is exactly 0 where li is OOB
            S[li[valid], lo[valid]] += W[k][valid]
            k += 1
    return S


# ----------------------------------------------------------------------------
# Kernels
# ----------------------------------------------------------------------------
def _darcy_matmul_kernel(x_ref, s_ref, o_ref):
    # x_ref: (TB, N*N) lane-dense, s_ref: (N*N, N*N) banded operator,
    # o_ref: (TB, N*N).  One MXU op; HIGHEST precision keeps full f32 accuracy
    # (default precision would round operands to bf16 for a single pass).
    o_ref[...] = jnp.dot(
        x_ref[...].astype(jnp.float32), s_ref[...],
        preferred_element_type=jnp.float32,
        precision=jax.lax.Precision.HIGHEST,
    ).astype(o_ref.dtype)


def _darcy_stencil_kernel(x_ref, w_ref, o_ref, *, n):
    # Fallback for large N: 9-term variable-coefficient stencil via lane rolls.
    # x_ref: (TB, N*N) lane-dense, w_ref: (9, N*N), o_ref: (TB, N*N).
    nn = x_ref.shape[-1]
    x = x_ref[...].astype(jnp.float32)
    w = w_ref[...]                               # load the weight table once
    terms = []
    k = 0
    for dr in (-1, 0, 1):
        for dc in (-1, 0, 1):
            # xs[b, l] = x[b, l + dr*n + dc]; wrapped lanes have weight 0.
            shift = (-(dr * n + dc)) % nn
            xs = x if shift == 0 else pltpu.roll(x, shift, axis=1)
            terms.append(w[k:k + 1, :] * xs)     # (1, NN) broadcasts over TB
            k += 1
    # Pairwise tree reduction: dependent-add chain of 4 instead of 8.
    while len(terms) > 1:
        nxt = [terms[i] + terms[i + 1] for i in range(0, len(terms) - 1, 2)]
        if len(terms) % 2:
            nxt.append(terms[-1])
        terms = nxt
    o_ref[...] = terms[0].astype(o_ref.dtype)    # single dense, unmasked store


def _choose_tb(batch, nn, num_cores, max_block_bytes):
    """Batch rows of the flattened (B, N*N) input handled per grid step."""
    pb = _round_up(batch, 8)
    cap = max(8, (max_block_bytes // (nn * 4)) // 8 * 8)
    tb = min(cap, pb)
    # Split only when the chip has >= 2 TensorCores (v7x).  On v5e/v6e the
    # grid is a serial loop, so an extra step is pure ~0.35 us overhead.
    if num_cores >= 2 and pb > 8 and tb >= pb:
        tb = max(8, _round_up(-(-pb // num_cores), 8))
    # TODO(synk): very large N (a single 8-row block exceeding the cap) would
    # need an additional spatial tiling axis; not needed at these sizes.
    return tb


# ----------------------------------------------------------------------------
# Module-like wrapper: builds the operator once, jits the forward once.
# ----------------------------------------------------------------------------
class DarcyFlowPallas:
    """Pallas port of DarcyFlow.forward with all `a`-dependent work cached."""

    def __init__(self, a, use_matmul=None):
        a_np = np.asarray(jax.device_get(a), np.float32)
        n = a_np.shape[-1] + 1
        self.n = n
        nn = n * n
        if use_matmul is None:
            use_matmul = nn * nn * 4 <= _MATMUL_S_BUDGET_BYTES
        self.use_matmul = bool(use_matmul)
        self.num_cores = _num_tensorcores()
        if self.use_matmul:
            self._op = jnp.asarray(_operator_matrix_np(a_np, n))       # (NN, NN)
        else:
            self._op = jnp.asarray(_stencil_weight_maps_np(a_np, n))   # (9, NN)
        self._fwd = jax.jit(self._forward_impl)

    def __call__(self, x):
        return self._fwd(x)

    # Traced under jit; all shape logic below is static.
    def _forward_impl(self, x):
        xdim = x.ndim
        n = self.n
        nn = n * n
        if xdim == 1:
            x = x.reshape(1, 1, n, n)
        B = x.shape[0]
        assert x.shape[1] == 1 and x.shape[-2] == n and x.shape[-1] == n
        x_flat = x.reshape(B, nn)             # spatial grid on the lane axis

        max_block = (2 << 20) if self.use_matmul else (512 << 10)
        tb = _choose_tb(B, nn, self.num_cores, max_block)
        pB = _round_up(B, tb)
        if pB != B:
            x_flat = jnp.pad(x_flat, ((0, pB - B), (0, 0)))

        if self.use_matmul:
            kernel = _darcy_matmul_kernel
            op_spec = pl.BlockSpec((nn, nn), lambda b: (0, 0))
        else:
            kernel = functools.partial(_darcy_stencil_kernel, n=n)
            op_spec = pl.BlockSpec((9, nn), lambda b: (0, 0))

        # TODO(synk): on v7x, verify via xprof that the "parallel" axis really
        # lands on both TensorCores; if not, switch it to pltpu.CORE_PARALLEL.
        out = pl.pallas_call(
            kernel,
            out_shape=jax.ShapeDtypeStruct((pB, nn), x.dtype),
            grid_spec=pltpu.PrefetchScalarGridSpec(
                num_scalar_prefetch=0,
                grid=(pB // tb,),
                in_specs=[
                    pl.BlockSpec((tb, nn), lambda b: (b, 0)),
                    op_spec,
                ],
                out_specs=pl.BlockSpec((tb, nn), lambda b: (b, 0)),
            ),
            compiler_params=pltpu.CompilerParams(
                dimension_semantics=("parallel",),
                vmem_limit_bytes=32 * 1024 * 1024,
            ),
        )(x_flat, self._op)

        out = out[:B].reshape(B, 1, n, n)
        if xdim == 1:
            return out.reshape(-1)
        return out


# ----------------------------------------------------------------------------
# Pure-JAX reference mirroring the PyTorch forward (for validation).
# ----------------------------------------------------------------------------
def ref_forward(x, a):
    N = x.shape[-1]
    x1 = x[:, :, 1:N, : N - 1] * a
    x2 = x[:, :, 1:N, 1:] * a
    x3 = x[:, :, : N - 1, 1:] * a
    x4 = x[:, :, : N - 1, : N - 1] * a
    X = jnp.concatenate([x1, x2, x3, x4], axis=1)
    K = jnp.asarray(KVALS[None], dtype=x.dtype)   # (1, 4, 2, 2) OIHW
    Ax = jax.lax.conv_general_dilated(
        X, K, window_strides=(1, 1), padding="VALID",
        dimension_numbers=("NCHW", "OIHW", "NCHW"),
    )
    return jnp.pad(Ax, ((0, 0), (0, 0), (1, 1), (1, 1)))


if __name__ == "__main__":
    B, N = 8, 16
    key = jax.random.PRNGKey(0)
    k1, k2, k3 = jax.random.split(key, 3)
    x = jax.random.normal(k1, (B, 1, N, N), dtype=jnp.float32)
    # coefficient field `a` (as passed to DarcyFlow.__init__), kept positive
    a = jax.random.uniform(k2, (1, 1, N - 1, N - 1), dtype=jnp.float32) + 0.5

    ref = ref_forward(x, a)

    # Main path: banded-operator MXU matmul kernel (operator built once).
    op = DarcyFlowPallas(a)
    out = jax.block_until_ready(op(x))
    assert out.shape == (B, 1, N, N)
    assert jnp.allclose(out, ref, atol=1e-4, rtol=1e-4), "matmul path mismatch"

    # Flat-vector path (xdim == 1), as exercised by the PyTorch module.
    xv = jax.random.normal(k3, (N * N,), dtype=jnp.float32)
    outv = jax.block_until_ready(op(xv))
    refv = ref_forward(xv.reshape(1, 1, N, N), a).reshape(-1)
    assert jnp.allclose(outv, refv, atol=1e-4, rtol=1e-4), "flat-path mismatch"

    # Roll-based stencil fallback (auto-selected for large N); exercised here
    # explicitly for compile/correctness coverage.
    op_fb = DarcyFlowPallas(a, use_matmul=False)
    out_fb = jax.block_until_ready(op_fb(x))
    assert jnp.allclose(out_fb, ref, atol=1e-4, rtol=1e-4), "stencil fallback mismatch"

    print("KERNEL_OK")
</pallas_src>

<mosaic_0001>
module attributes {stable_mosaic.version = 11 : i64} {
  func.func @_darcy_matmul_kernel(%arg0: i32, %arg1: memref<8x256xf32, #tpu.memory_space<vmem>>, %arg2: memref<256x256xf32, #tpu.memory_space<vmem>>, %arg3: memref<8x256xf32, #tpu.memory_space<vmem>>) attributes {dimension_semantics = [#tpu.dimension_semantics<parallel>], iteration_bounds = array<i64: 1>, scalar_prefetch = 0 : i64, scratch_operands = 0 : i64, tpu.core_type = #tpu.core_type<tc>, window_params = [{transform_indices = @transform_0, window_bounds = array<i64: 8, 256>}, {pipeline_mode = #tpu.pipeline_mode<synchronous>, transform_indices = @transform_1, window_bounds = array<i64: 256, 256>}, {transform_indices = @transform_2, window_bounds = array<i64: 8, 256>}]} {
    %c0 = arith.constant 0 : index
    %c0_0 = arith.constant 0 : index
    %0 = vector.load %arg1[%c0, %c0_0] : memref<8x256xf32, #tpu.memory_space<vmem>>, vector<8x256xf32>
    %c0_1 = arith.constant 0 : index
    %c0_2 = arith.constant 0 : index
    %1 = vector.load %arg2[%c0_1, %c0_2] : memref<256x256xf32, #tpu.memory_space<vmem>>, vector<256x256xf32>
    %cst = arith.constant dense<0.000000e+00> : vector<8x256xf32>
    %2 = tpu.matmul %0, %1, %cst {dimension_numbers = #tpu.dot_dimension_numbers<[1], [0], [0], [1], [0, 0, 1, 1], [], []>, precision = #tpu.contract_precision<fp32>} : vector<8x256xf32>, vector<256x256xf32>, vector<8x256xf32> -> vector<8x256xf32>
    %c0_3 = arith.constant 0 : index
    %c0_4 = arith.constant 0 : index
    %3 = vector.load %arg3[%c0_3, %c0_4] : memref<8x256xf32, #tpu.memory_space<vmem>>, vector<8x256xf32>
    tpu.vector_store %arg3[%c0_3, %c0_4], %2 {strides = array<i32>} : memref<8x256xf32, #tpu.memory_space<vmem>>, vector<8x256xf32>,
    return
  }
  func.func @transform_0(%arg0: i32) -> (i32, i32) {
    %c0_i32 = arith.constant 0 : i32
    %c0_i32_0 = arith.constant 0 : i32
    return %arg0, %c0_i32 : i32, i32
  }
  func.func @transform_1(%arg0: i32) -> (i32, i32) {
    %c0_i32 = arith.constant 0 : i32
    %c0_i32_0 = arith.constant 0 : i32
    %c0_i32_1 = arith.constant 0 : i32
    return %c0_i32, %c0_i32_0 : i32, i32
  }
  func.func @transform_2(%arg0: i32) -> (i32, i32) {
    %c0_i32 = arith.constant 0 : i32
    %c0_i32_0 = arith.constant 0 : i32
    return %arg0, %c0_i32 : i32, i32
  }
}

</mosaic_0001>

<llo_original>
// kernel: _forward_impl.1
$region0: #{_forward_impl.1}
  #allocation0 [shape = 'u32[]', space=smem, size = 0x4, offset = 0x4, fixed_abs, tag = 'smem constant byte address 0x4 - core index']
  #allocation1 [shape = 'u32[144,128]{1,0:T(1,128)}', space=vmem, size = 0x12000, scoped, tag = 'internal scratch']
  %s0 = inlined_call_operand.vmem [shape: f32[8,256], index: 0, kind: input, shape index: {}]
  %s1 = inlined_call_operand.hbm [shape: f32[256,256], index: 1, kind: input, shape index: {}]
  %s2 = inlined_call_operand.vmem [shape: f32[8,256], index: 2, kind: output, shape index: {}]
  %s3 = sld [smem:[#allocation0]]
  $region22: #{_forward_impl.1} parent=0
    _
  %s5 = ssub.s32 1, %s3
  %s6 = scalar_select 0, %s5, %s3
  $region1: #{_forward_impl.1} parent=0
    #allocation2 [shape = 'u8[262144]{0}', space=vmem, size = 0x40000, scoped, tag = 'input window, operand 1, single buffered']
    #allocation3 [shape = 's32[1]{0}', space=sflag, size = 0x4, scoped, tag = 'scoped memory for _forward_impl.1']
    %7 = vsyncpa [#allocation3], 0
    // Predicated region
    $region2: #{_forward_impl.1} parent=1 // pred_check
      _
    $region3: #{_forward_impl.1} parent=1 // pred_check_branch
      %9 = sbr.rel (0) target = $region5
    $region4: #{_forward_impl.1} parent=1 // pred_region
      _
    $region5: #{_forward_impl.1} parent=1 // pred_fallthru
      _
    // Predicated region
    $region6: #{_forward_impl.1} parent=1 // pred_check
      _
    $region7: #{_forward_impl.1} parent=1 // pred_check_branch
      %11 = sbr.rel (0) target = $region9
    $region8: #{_forward_impl.1} parent=1 // pred_region
      %s13 = ssub.s32 8192, 8192
      %14 = vsyncadd [#allocation3], %s13
      %s15 = sshll.u32 [#allocation2], 4
      %s16 = int_to_ptr.vmem [resolvable:$true] %s15
      %21 = dma.hbm_to_vmem [thread:$0]  %s1, 8192, %s16, [#allocation3], 256, 256, 16
    $region9: #{_forward_impl.1} parent=1 // pred_fallthru
      _
    // Predicated region
    $region10: #{_forward_impl.1} parent=1 // pred_check
      _
    $region11: #{_forward_impl.1} parent=1 // pred_check_branch
      %23 = sbr.rel (0) target = $region13
    $region12: #{_forward_impl.1} parent=1 // pred_region
      %24 = dma.done [#allocation3], 8192
    $region13: #{_forward_impl.1} parent=1 // pred_fallthru
      _
    %v25 = vld [vmem:[%s0] sm:$0xff]
    %v26 = vld [vmem:[%s0 + $0x8] sm:$0xff]
    %v27 = vld [vmem:[#allocation2] sm:$0xff]
    %v28 = vld [vmem:[#allocation2 + $0x8] sm:$0xff]
    %v29 = vld [vmem:[#allocation2 + $0x10] sm:$0xff]
    %v30 = vld [vmem:[#allocation2 + $0x18] sm:$0xff]
    %v31 = vld [vmem:[#allocation2 + $0x20] sm:$0xff]
    %v32 = vld [vmem:[#allocation2 + $0x28] sm:$0xff]
    %v33 = vld [vmem:[#allocation2 + $0x30] sm:$0xff]
    %v34 = vld [vmem:[#allocation2 + $0x38] sm:$0xff]
    %v35 = vld [vmem:[#allocation2 + $0x40] sm:$0xff]
    %v36 = vld [vmem:[#allocation2 + $0x48] sm:$0xff]
    %v37 = vld [vmem:[#allocation2 + $0x50] sm:$0xff]
    %v38 = vld [vmem:[#allocation2 + $0x58] sm:$0xff]
    %v39 = vld [vmem:[#allocation2 + $0x60] sm:$0xff]
    %v40 = vld [vmem:[#allocation2 + $0x68] sm:$0xff]
    %v41 = vld [vmem:[#allocation2 + $0x70] sm:$0xff]
    %v42 = vld [vmem:[#allocation2 + $0x78] sm:$0xff]
    %v43 = vld [vmem:[#allocation2 + $0x80] sm:$0xff]
    %v44 = vld [vmem:[#allocation2 + $0x88] sm:$0xff]
    %v45 = vld [vmem:[#allocation2 + $0x90] sm:$0xff]
    %v46 = vld [vmem:[#allocation2 + $0x98] sm:$0xff]
    %v47 = vld [vmem:[#allocation2 + $0xa0] sm:$0xff]
    %v48 = vld [vmem:[#allocation2 + $0xa8] sm:$0xff]
    %v49 = vld [vmem:[#allocation2 + $0xb0] sm:$0xff]
    %v50 = vld [vmem:[#allocation2 + $0xb8] sm:$0xff]
    %v51 = vld [vmem:[#allocation2 + $0xc0] sm:$0xff]
    %v52 = vld [vmem:[#allocation2 + $0xc8] sm:$0xff]
    %v53 = vld [vmem:[#allocation2 + $0xd0] sm:$0xff]
    %v54 = vld [vmem:[#allocation2 + $0xd8] sm:$0xff]
    %v55 = vld [vmem:[#allocation2 + $0xe0] sm:$0xff]
    %v56 = vld [vmem:[#allocation2 + $0xe8] sm:$0xff]
    %v57 = vld [vmem:[#allocation2 + $0xf0] sm:$0xff]
    %v58 = vld [vmem:[#allocation2 + $0xf8] sm:$0xff]
    %v59 = vld [vmem:[#allocation2 + $0x100] sm:$0xff]
    %v60 = vld [vmem:[#allocation2 + $0x108] sm:$0xff]
    %v61 = vld [vmem:[#allocation2 + $0x110] sm:$0xff]
    %v62 = vld [vmem:[#allocation2 + $0x118] sm:$0xff]
    %v63 = vld [vmem:[#allocation2 + $0x120] sm:$0xff]
    %v64 = vld [vmem:[#allocation2 + $0x128] sm:$0xff]
    %v65 = vld [vmem:[#allocation2 + $0x130] sm:$0xff]
    %v66 = vld [vmem:[#allocation2 + $0x138] sm:$0xff]
    %v67 = vld [vmem:[#allocation2 + $0x140] sm:$0xff]
    %v68 = vld [vmem:[#allocation2 + $0x148] sm:$0xff]
    %v69 = vld [vmem:[#allocation2 + $0x150] sm:$0xff]
    %v70 = vld [vmem:[#allocation2 + $0x158] sm:$0xff]
    %v71 = vld [vmem:[#allocation2 + $0x160] sm:$0xff]
    %v72 = vld [vmem:[#allocation2 + $0x168] sm:$0xff]
    %v73 = vld [vmem:[#allocation2 + $0x170] sm:$0xff]
    %v74 = vld [vmem:[#allocation2 + $0x178] sm:$0xff]
    %v75 = vld [vmem:[#allocation2 + $0x180] sm:$0xff]
    %v76 = vld [vmem:[#allocation2 + $0x188] sm:$0xff]
    %v77 = vld [vmem:[#allocation2 + $0x190] sm:$0xff]
    %v78 = vld [vmem:[#allocation2 + $0x198] sm:$0xff]
    %v79 = vld [vmem:[#allocation2 + $0x1a0] sm:$0xff]
    %v80 = vld [vmem:[#allocation2 + $0x1a8] sm:$0xff]
    %v81 = vld [vmem:[#allocation2 + $0x1b0] sm:$0xff]
    %v82 = vld [vmem:[#allocation2 + $0x1b8] sm:$0xff]
    %v83 = vld [vmem:[#allocation2 + $0x1c0] sm:$0xff]
    %v84 = vld [vmem:[#allocation2 + $0x1c8] sm:$0xff]
    %v85 = vld [vmem:[#allocation2 + $0x1d0] sm:$0xff]
    %v86 = vld [vmem:[#allocation2 + $0x1d8] sm:$0xff]
    %v87 = vld [vmem:[#allocation2 + $0x1e0] sm:$0xff]
    %v88 = vld [vmem:[#allocation2 + $0x1e8] sm:$0xff]
    %v89 = vld [vmem:[#allocation2 + $0x1f0] sm:$0xff]
    %v90 = vld [vmem:[#allocation2 + $0x1f8] sm:$0xff]
    %v91 = vand.u32 %v28, 4294901760
    %92 = vmatprep.subr.mxu0 %v91
    %v93 = vand.u32 %v27, 4294901760
    %94 = vmatpush1.msra.mxu0 %v93
    %v95 = vand.u32 %v30, 4294901760
    %96 = vmatprep.subr.mxu0 %v95
    %v97 = vand.u32 %v29, 4294901760
    %98 = vmatpush1.msra.mxu0 %v97
    %v99 = vand.u32 %v32, 4294901760
    %100 = vmatprep.subr.mxu0 %v99
    %v101 = vand.u32 %v31, 4294901760
    %102 = vmatpush1.msra.mxu0 %v101
    %v103 = vand.u32 %v34, 4294901760
    %104 = vmatprep.subr.mxu0 %v103
    %v105 = vand.u32 %v33, 4294901760
    %106 = vmatpush1.msra.mxu0 %v105
    %v107 = vand.u32 %v36, 4294901760
    %108 = vmatprep.subr.mxu0 %v107
    %v109 = vand.u32 %v35, 4294901760
    %110 = vmatpush1.msra.mxu0 %v109
    %v111 = vand.u32 %v38, 4294901760
    %112 = vmatprep.subr.mxu0 %v111
    %v113 = vand.u32 %v37, 4294901760
    %114 = vmatpush1.msra.mxu0 %v113
    %v115 = vand.u32 %v40, 4294901760
    %116 = vmatprep.subr.mxu0 %v115
    %v117 = vand.u32 %v39, 4294901760
    %118 = vmatpush1.msra.mxu0 %v117
    %v119 = vand.u32 %v42, 4294901760
    %120 = vmatprep.subr.mxu0 %v119
    %v121 = vand.u32 %v41, 4294901760
    %122 = vmatpush1.msra.mxu0 %v121
    %v123 = vand.u32 %v44, 4294901760
    %124 = vmatprep.subr.mxu0 %v123
    %v125 = vand.u32 %v43, 4294901760
    %126 = vmatpush1.msra.mxu0 %v125
    %v127 = vand.u32 %v46, 4294901760
    %128 = vmatprep.subr.mxu0 %v127
    %v129 = vand.u32 %v45, 4294901760
    %130 = vmatpush1.msra.mxu0 %v129
    %v131 = vand.u32 %v48, 4294901760
    %132 = vmatprep.subr.mxu0 %v131
    %v133 = vand.u32 %v47, 4294901760
    %134 = vmatpush1.msra.mxu0 %v133
    %v135 = vand.u32 %v50, 4294901760
    %136 = vmatprep.subr.mxu0 %v135
    %v137 = vand.u32 %v49, 4294901760
    %138 = vmatpush1.msra.mxu0 %v137
    %v139 = vand.u32 %v52, 4294901760
    %140 = vmatprep.subr.mxu0 %v139
    %v141 = vand.u32 %v51, 4294901760
    %142 = vmatpush1.msra.mxu0 %v141
    %v143 = vand.u32 %v54, 4294901760
    %144 = vmatprep.subr.mxu0 %v143
    %v145 = vand.u32 %v53, 4294901760
    %146 = vmatpush1.msra.mxu0 %v145
    %v147 = vand.u32 %v56, 4294901760
    %148 = vmatprep.subr.mxu0 %v147
    %v149 = vand.u32 %v55, 4294901760
    %150 = vmatpush1.msra.mxu0 %v149
    %v151 = vand.u32 %v58, 4294901760
    %152 = vmatprep.subr.mxu0 %v151
    %v153 = vand.u32 %v57, 4294901760
    %154 = vmatpush1.msra.mxu0 %v153
    %v155 = vand.u32 %v60, 4294901760
    %156 = vmatprep.subr.mxu0 %v155
    %v157 = vand.u32 %v59, 4294901760
    %158 = vmatpush1.msra.mxu0 %v157
    %v159 = vand.u32 %v62, 4294901760
    %160 = vmatprep.subr.mxu0 %v159
    %v161 = vand.u32 %v61, 4294901760
    %162 = vmatpush1.msra.mxu0 %v161
    %v163 = vand.u32 %v64, 4294901760
    %164 = vmatprep.subr.mxu0 %v163
    %v165 = vand.u32 %v63, 4294901760
    %166 = vmatpush1.msra.mxu0 %v165
    %v167 = vand.u32 %v66, 4294901760
    %168 = vmatprep.subr.mxu0 %v167
    %v169 = vand.u32 %v65, 4294901760
    %170 = vmatpush1.msra.mxu0 %v169
    %v171 = vand.u32 %v68, 4294901760
    %172 = vmatprep.subr.mxu0 %v171
    %v173 = vand.u32 %v67, 4294901760
    %174 = vmatpush1.msra.mxu0 %v173
    %v175 = vand.u32 %v70, 4294901760
    %176 = vmatprep.subr.mxu0 %v175
    %v177 = vand.u32 %v69, 4294901760
    %178 = vmatpush1.msra.mxu0 %v177
    %v179 = vand.u32 %v72, 4294901760
    %180 = vmatprep.subr.mxu0 %v179
    %v181 = vand.u32 %v71, 4294901760
    %182 = vmatpush1.msra.mxu0 %v181
    %v183 = vand.u32 %v74, 4294901760
    %184 = vmatprep.subr.mxu0 %v183
    %v185 = vand.u32 %v73, 4294901760
    %186 = vmatpush1.msra.mxu0 %v185
    %v187 = vand.u32 %v76, 4294901760
    %188 = vmatprep.subr.mxu0 %v187
    %v189 = vand.u32 %v75, 4294901760
    %190 = vmatpush1.msra.mxu0 %v189
    %v191 = vand.u32 %v78, 4294901760
    %192 = vmatprep.subr.mxu0 %v191
    %v193 = vand.u32 %v77, 4294901760
    %194 = vmatpush1.msra.mxu0 %v193
    %v195 = vand.u32 %v80, 4294901760
    %196 = vmatprep.subr.mxu0 %v195
    %v197 = vand.u32 %v79, 4294901760
    %198 = vmatpush1.msra.mxu0 %v197
    %v199 = vand.u32 %v82, 4294901760
    %200 = vmatprep.subr.mxu0 %v199
    %v201 = vand.u32 %v81, 4294901760
    %202 = vmatpush1.msra.mxu0 %v201
    %v203 = vand.u32 %v84, 4294901760
    %204 = vmatprep.subr.mxu0 %v203
    %v205 = vand.u32 %v83, 4294901760
    %206 = vmatpush1.msra.mxu0 %v205
    %v207 = vand.u32 %v86, 4294901760
    %208 = vmatprep.subr.mxu0 %v207
    %v209 = vand.u32 %v85, 4294901760
    %210 = vmatpush1.msra.mxu0 %v209
    %v211 = vand.u32 %v88, 4294901760
    %212 = vmatprep.subr.mxu0 %v211
    %v213 = vand.u32 %v87, 4294901760
    %214 = vmatpush1.msra.mxu0 %v213
    %v215 = vand.u32 %v90, 4294901760
    %216 = vmatprep.subr.mxu0 %v215
    %v217 = vand.u32 %v89, 4294901760
    %218 = vmatpush1.msra.mxu0 %v217
    %v219 = vand.u32 %v26, 4294901760
    %v220 = vsub.f32 %v26, %v219
    %v221 = vand.u32 %v220, 4294901760
    %v222 = vsub.f32 %v220, %v221
    %v223 = vand.u32 %v222, 4294901760
    %224 = vmatprep.mubr.f32.mxu0 %v223
    %v225 = vand.u32 %v25, 4294901760
    %v226 = vsub.f32 %v25, %v225
    %v227 = vand.u32 %v226, 4294901760
    %v228 = vsub.f32 %v226, %v227
    %v229 = vand.u32 %v228, 4294901760
    %230 = vmatmul.mubr.f32.gmra.mrb[0].mxu0 %v229
    %v231 = vpop.f32.mrb[0].mxu0
    %v232 = vadd.f32 0.0, %v231
    %v233 = vpop.f32.mrb[0].mxu0
    %v234 = vadd.f32 0.0, %v233
    %235 = vdwg.mxu0
    %v236 = vand.u32 %v28, 4294901760
    %v237 = vsub.f32 %v28, %v236
    %v238 = vand.u32 %v237, 4294901760
    %v239 = vsub.f32 %v237, %v238
    %v240 = vand.u32 %v239, 4294901760
    %241 = vmatprep.subr.mxu0 %v240
    %v242 = vand.u32 %v27, 4294901760
    %v243 = vsub.f32 %v27, %v242
    %v244 = vand.u32 %v243, 4294901760
    %v245 = vsub.f32 %v243, %v244
    %v246 = vand.u32 %v245, 4294901760
    %247 = vmatpush1.msra.mxu0 %v246
    %v248 = vand.u32 %v30, 4294901760
    %v249 = vsub.f32 %v30, %v248
    %v250 = vand.u32 %v249, 4294901760
    %v251 = vsub.f32 %v249, %v250
    %v252 = vand.u32 %v251, 4294901760
    %253 = vmatprep.subr.mxu0 %v252
    %v254 = vand.u32 %v29, 4294901760
    %v255 = vsub.f32 %v29, %v254
    %v256 = vand.u32 %v255, 4294901760
    %v257 = vsub.f32 %v255, %v256
    %v258 = vand.u32 %v257, 4294901760
    %259 = vmatpush1.msra.mxu0 %v258
    %v260 = vand.u32 %v32, 4294901760
    %v261 = vsub.f32 %v32, %v260
    %v262 = vand.u32 %v261, 4294901760
    %v263 = vsub.f32 %v261, %v262
    %v264 = vand.u32 %v263, 4294901760
    %265 = vmatprep.subr.mxu0 %v264
    %v266 = vand.u32 %v31, 4294901760
    %v267 = vsub.f32 %v31, %v266
    %v268 = vand.u32 %v267, 4294901760
    %v269 = vsub.f32 %v267, %v268
    %v270 = vand.u32 %v269, 4294901760
    %271 = vmatpush1.msra.mxu0 %v270
    %v272 = vand.u32 %v34, 4294901760
    %v273 = vsub.f32 %v34, %v272
    %v274 = vand.u32 %v273, 4294901760
    %v275 = vsub.f32 %v273, %v274
    %v276 = vand.u32 %v275, 4294901760
    %277 = vmatprep.subr.mxu0 %v276
    %v278 = vand.u32 %v33, 4294901760
    %v279 = vsub.f32 %v33, %v278
    %v280 = vand.u32 %v279, 4294901760
    %v281 = vsub.f32 %v279, %v280
    %v282 = vand.u32 %v281, 4294901760
    %283 = vmatpush1.msra.mxu0 %v282
    %v284 = vand.u32 %v36, 4294901760
    %v285 = vsub.f32 %v36, %v284
    %v286 = vand.u32 %v285, 4294901760
    %v287 = vsub.f32 %v285, %v286
    %v288 = vand.u32 %v287, 4294901760
    %289 = vmatprep.subr.mxu0 %v288
    %v290 = vand.u32 %v35, 4294901760
    %v291 = vsub.f32 %v35, %v290
    %v292 = vand.u32 %v291, 4294901760
    %v293 = vsub.f32 %v291, %v292
    %v294 = vand.u32 %v293, 4294901760
    %295 = vmatpush1.msra.mxu0 %v294
    %v296 = vand.u32 %v38, 4294901760
    %v297 = vsub.f32 %v38, %v296
    %v298 = vand.u32 %v297, 4294901760
    %v299 = vsub.f32 %v297, %v298
    %v300 = vand.u32 %v299, 4294901760
    %301 = vmatprep.subr.mxu0 %v300
    %v302 = vand.u32 %v37, 4294901760
    %v303 = vsub.f32 %v37, %v302
    %v304 = vand.u32 %v303, 4294901760
    %v305 = vsub.f32 %v303, %v304
    %v306 = vand.u32 %v305, 4294901760
    %307 = vmatpush1.msra.mxu0 %v306
    %v308 = vand.u32 %v40, 4294901760
    %v309 = vsub.f32 %v40, %v308
    %v310 = vand.u32 %v309, 4294901760
    %v311 = vsub.f32 %v309, %v310
    %v312 = vand.u32 %v311, 4294901760
    %313 = vmatprep.subr.mxu0 %v312
    %v314 = vand.u32 %v39, 4294901760
    %v315 = vsub.f32 %v39, %v314
    %v316 = vand.u32 %v315, 4294901760
    %v317 = vsub.f32 %v315, %v316
    %v318 = vand.u32 %v317, 4294901760
    %319 = vmatpush1.msra.mxu0 %v318
    %v320 = vand.u32 %v42, 4294901760
    %v321 = vsub.f32 %v42, %v320
    %v322 = vand.u32 %v321, 4294901760
    %v323 = vsub.f32 %v321, %v322
    %v324 = vand.u32 %v323, 4294901760
    %325 = vmatprep.subr.mxu0 %v324
    %v326 = vand.u32 %v41, 4294901760
    %v327 = vsub.f32 %v41, %v326
    %v328 = vand.u32 %v327, 4294901760
    %v329 = vsub.f32 %v327, %v328
    %v330 = vand.u32 %v329, 4294901760
    %331 = vmatpush1.msra.mxu0 %v330
    %v332 = vand.u32 %v44, 4294901760
    %v333 = vsub.f32 %v44, %v332
    %v334 = vand.u32 %v333, 4294901760
    %v335 = vsub.f32 %v333, %v334
    %v336 = vand.u32 %v335, 4294901760
    %337 = vmatprep.subr.mxu0 %v336
    %v338 = vand.u32 %v43, 4294901760
    %v339 = vsub.f32 %v43, %v338
    %v340 = vand.u32 %v339, 4294901760
    %v341 = vsub.f32 %v339, %v340
    %v342 = vand.u32 %v341, 4294901760
    %343 = vmatpush1.msra.mxu0 %v342
    %v344 = vand.u32 %v46, 4294901760
    %v345 = vsub.f32 %v46, %v344
    %v346 = vand.u32 %v345, 4294901760
    %v347 = vsub.f32 %v345, %v346
    %v348 = vand.u32 %v347, 4294901760
    %349 = vmatprep.subr.mxu0 %v348
    %v350 = vand.u32 %v45, 4294901760
    %v351 = vsub.f32 %v45, %v350
    %v352 = vand.u32 %v351, 4294901760
    %v353 = vsub.f32 %v351, %v352
    %v354 = vand.u32 %v353, 4294901760
    %355 = vmatpush1.msra.mxu0 %v354
    %v356 = vand.u32 %v48, 4294901760
    %v357 = vsub.f32 %v48, %v356
    %v358 = vand.u32 %v357, 4294901760
    %v359 = vsub.f32 %v357, %v358
    %v360 = vand.u32 %v359, 4294901760
    %361 = vmatprep.subr.mxu0 %v360
    %v362 = vand.u32 %v47, 4294901760
    %v363 = vsub.f32 %v47, %v362
    %v364 = vand.u32 %v363, 4294901760
    %v365 = vsub.f32 %v363, %v364
    %v366 = vand.u32 %v365, 4294901760
    %367 = vmatpush1.msra.mxu0 %v366
    %v368 = vand.u32 %v50, 4294901760
    %v369 = vsub.f32 %v50, %v368
    %v370 = vand.u32 %v369, 4294901760
    %v371 = vsub.f32 %v369, %v370
    %v372 = vand.u32 %v371, 4294901760
    %373 = vmatprep.subr.mxu0 %v372
    %v374 = vand.u32 %v49, 4294901760
    %v375 = vsub.f32 %v49, %v374
    %v376 = vand.u32 %v375, 4294901760
    %v377 = vsub.f32 %v375, %v376
    %v378 = vand.u32 %v377, 4294901760
    %379 = vmatpush1.msra.mxu0 %v378
    %v380 = vand.u32 %v52, 4294901760
    %v381 = vsub.f32 %v52, %v380
    %v382 = vand.u32 %v381, 4294901760
    %v383 = vsub.f32 %v381, %v382
    %v384 = vand.u32 %v383, 4294901760
    %385 = vmatprep.subr.mxu0 %v384
    %v386 = vand.u32 %v51, 4294901760
    %v387 = vsub.f32 %v51, %v386
    %v388 = vand.u32 %v387, 4294901760
    %v389 = vsub.f32 %v387, %v388
    %v390 = vand.u32 %v389, 4294901760
    %391 = vmatpush1.msra.mxu0 %v390
    %v392 = vand.u32 %v54, 4294901760
    %v393 = vsub.f32 %v54, %v392
    %v394 = vand.u32 %v393, 4294901760
    %v395 = vsub.f32 %v393, %v394
    %v396 = vand.u32 %v395, 4294901760
    %397 = vmatprep.subr.mxu0 %v396
    %v398 = vand.u32 %v53, 4294901760
    %v399 = vsub.f32 %v53, %v398
    %v400 = vand.u32 %v399, 4294901760
    %v401 = vsub.f32 %v399, %v400
    %v402 = vand.u32 %v401, 4294901760
    %403 = vmatpush1.msra.mxu0 %v402
    %v404 = vand.u32 %v56, 4294901760
    %v405 = vsub.f32 %v56, %v404
    %v406 = vand.u32 %v405, 4294901760
    %v407 = vsub.f32 %v405, %v406
    %v408 = vand.u32 %v407, 4294901760
    %409 = vmatprep.subr.mxu0 %v408
    %v410 = vand.u32 %v55, 4294901760
    %v411 = vsub.f32 %v55, %v410
    %v412 = vand.u32 %v411, 4294901760
    %v413 = vsub.f32 %v411, %v412
    %v414 = vand.u32 %v413, 4294901760
    %415 = vmatpush1.msra.mxu0 %v414
    %v416 = vand.u32 %v58, 4294901760
    %v417 = vsub.f32 %v58, %v416
    %v418 = vand.u32 %v417, 4294901760
    %v419 = vsub.f32 %v417, %v418
    %v420 = vand.u32 %v419, 4294901760
    %421 = vmatprep.subr.mxu0 %v420
    %v422 = vand.u32 %v57, 4294901760
    %v423 = vsub.f32 %v57, %v422
    %v424 = vand.u32 %v423, 4294901760
    %v425 = vsub.f32 %v423, %v424
    %v426 = vand.u32 %v425, 4294901760
    %427 = vmatpush1.msra.mxu0 %v426
    %v428 = vand.u32 %v60, 4294901760
    %v429 = vsub.f32 %v60, %v428
    %v430 = vand.u32 %v429, 4294901760
    %v431 = vsub.f32 %v429, %v430
    %v432 = vand.u32 %v431, 4294901760
    %433 = vmatprep.subr.mxu0 %v432
    %v434 = vand.u32 %v59, 4294901760
    %v435 = vsub.f32 %v59, %v434
    %v436 = vand.u32 %v435, 4294901760
    %v437 = vsub.f32 %v435, %v436
    %v438 = vand.u32 %v437, 4294901760
    %439 = vmatpush1.msra.mxu0 %v438
    %v440 = vand.u32 %v62, 4294901760
    %v441 = vsub.f32 %v62, %v440
    %v442 = vand.u32 %v441, 4294901760
    %v443 = vsub.f32 %v441, %v442
    %v444 = vand.u32 %v443, 4294901760
    %445 = vmatprep.subr.mxu0 %v444
    %v446 = vand.u32 %v61, 4294901760
    %v447 = vsub.f32 %v61, %v446
    %v448 = vand.u32 %v447, 4294901760
    %v449 = vsub.f32 %v447, %v448
    %v450 = vand.u32 %v449, 4294901760
    %451 = vmatpush1.msra.mxu0 %v450
    %v452 = vand.u32 %v64, 4294901760
    %v453 = vsub.f32 %v64, %v452
    %v454 = vand.u32 %v453, 4294901760
    %v455 = vsub.f32 %v453, %v454
    %v456 = vand.u32 %v455, 4294901760
    %457 = vmatprep.subr.mxu0 %v456
    %v458 = vand.u32 %v63, 4294901760
    %v459 = vsub.f32 %v63, %v458
    %v460 = vand.u32 %v459, 4294901760
    %v461 = vsub.f32 %v459, %v460
    %v462 = vand.u32 %v461, 4294901760
    %463 = vmatpush1.msra.mxu0 %v462
    %v464 = vand.u32 %v66, 4294901760
    %v465 = vsub.f32 %v66, %v464
    %v466 = vand.u32 %v465, 4294901760
    %v467 = vsub.f32 %v465, %v466
    %v468 = vand.u32 %v467, 4294901760
    %469 = vmatprep.subr.mxu0 %v468
    %v470 = vand.u32 %v65, 4294901760
    %v471 = vsub.f32 %v65, %v470
    %v472 = vand.u32 %v471, 4294901760
    %v473 = vsub.f32 %v471, %v472
    %v474 = vand.u32 %v473, 4294901760
    %475 = vmatpush1.msra.mxu0 %v474
    %v476 = vand.u32 %v68, 4294901760
    %v477 = vsub.f32 %v68, %v476
    %v478 = vand.u32 %v477, 4294901760
    %v479 = vsub.f32 %v477, %v478
    %v480 = vand.u32 %v479, 4294901760
    %481 = vmatprep.subr.mxu0 %v480
    %v482 = vand.u32 %v67, 4294901760
    %v483 = vsub.f32 %v67, %v482
    %v484 = vand.u32 %v483, 4294901760
    %v485 = vsub.f32 %v483, %v484
    %v486 = vand.u32 %v485, 4294901760
    %487 = vmatpush1.msra.mxu0 %v486
    %v488 = vand.u32 %v70, 4294901760
    %v489 = vsub.f32 %v70, %v488
    %v490 = vand.u32 %v489, 4294901760
    %v491 = vsub.f32 %v489, %v490
    %v492 = vand.u32 %v491, 4294901760
    %493 = vmatprep.subr.mxu0 %v492
    %v494 = vand.u32 %v69, 4294901760
    %v495 = vsub.f32 %v69, %v494
    %v496 = vand.u32 %v495, 4294901760
    %v497 = vsub.f32 %v495, %v496
    %v498 = vand.u32 %v497, 4294901760
    %499 = vmatpush1.msra.mxu0 %v498
    %v500 = vand.u32 %v72, 4294901760
    %v501 = vsub.f32 %v72, %v500
    %v502 = vand.u32 %v501, 4294901760
    %v503 = vsub.f32 %v501, %v502
    %v504 = vand.u32 %v503, 4294901760
    %505 = vmatprep.subr.mxu0 %v504
    %v506 = vand.u32 %v71, 4294901760
    %v507 = vsub.f32 %v71, %v506
    %v508 = vand.u32 %v507, 4294901760
    %v509 = vsub.f32 %v507, %v508
    %v510 = vand.u32 %v509, 4294901760
    %511 = vmatpush1.msra.mxu0 %v510
    %v512 = vand.u32 %v74, 4294901760
    %v513 = vsub.f32 %v74, %v512
    %v514 = vand.u32 %v513, 4294901760
    %v515 = vsub.f32 %v513, %v514
    %v516 = vand.u32 %v515, 4294901760
    %517 = vmatprep.subr.mxu0 %v516
    %v518 = vand.u32 %v73, 4294901760
    %v519 = vsub.f32 %v73, %v518
    %v520 = vand.u32 %v519, 4294901760
    %v521 = vsub.f32 %v519, %v520
    %v522 = vand.u32 %v521, 4294901760
    %523 = vmatpush1.msra.mxu0 %v522
    %v524 = vand.u32 %v76, 4294901760
    %v525 = vsub.f32 %v76, %v524
    %v526 = vand.u32 %v525, 4294901760
    %v527 = vsub.f32 %v525, %v526
    %v528 = vand.u32 %v527, 4294901760
    %529 = vmatprep.subr.mxu0 %v528
    %v530 = vand.u32 %v75, 4294901760
    %v531 = vsub.f32 %v75, %v530
    %v532 = vand.u32 %v531, 4294901760
    %v533 = vsub.f32 %v531, %v532
    %v534 = vand.u32 %v533, 4294901760
    %535 = vmatpush1.msra.mxu0 %v534
    %v536 = vand.u32 %v78, 4294901760
    %v537 = vsub.f32 %v78, %v536
    %v538 = vand.u32 %v537, 4294901760
    %v539 = vsub.f32 %v537, %v538
    %v540 = vand.u32 %v539, 4294901760
    %541 = vmatprep.subr.mxu0 %v540
    %v542 = vand.u32 %v77, 4294901760
    %v543 = vsub.f32 %v77, %v542
    %v544 = vand.u32 %v543, 4294901760
    %v545 = vsub.f32 %v543, %v544
    %v546 = vand.u32 %v545, 4294901760
    %547 = vmatpush1.msra.mxu0 %v546
    %v548 = vand.u32 %v80, 4294901760
    %v549 = vsub.f32 %v80, %v548
    %v550 = vand.u32 %v549, 4294901760
    %v551 = vsub.f32 %v549, %v550
    %v552 = vand.u32 %v551, 4294901760
    %553 = vmatprep.subr.mxu0 %v552
    %v554 = vand.u32 %v79, 4294901760
    %v555 = vsub.f32 %v79, %v554
    %v556 = vand.u32 %v555, 4294901760
    %v557 = vsub.f32 %v555, %v556
    %v558 = vand.u32 %v557, 4294901760
    %559 = vmatpush1.msra.mxu0 %v558
    %v560 = vand.u32 %v82, 4294901760
    %v561 = vsub.f32 %v82, %v560
    %v562 = vand.u32 %v561, 4294901760
    %v563 = vsub.f32 %v561, %v562
    %v564 = vand.u32 %v563, 4294901760
    %565 = vmatprep.subr.mxu0 %v564
    %v566 = vand.u32 %v81, 4294901760
    %v567 = vsub.f32 %v81, %v566
    %v568 = vand.u32 %v567, 4294901760
    %v569 = vsub.f32 %v567, %v568
    %v570 = vand.u32 %v569, 4294901760
    %571 = vmatpush1.msra.mxu0 %v570
    %v572 = vand.u32 %v84, 4294901760
    %v573 = vsub.f32 %v84, %v572
    %v574 = vand.u32 %v573, 4294901760
    %v575 = vsub.f32 %v573, %v574
    %v576 = vand.u32 %v575, 4294901760
    %577 = vmatprep.subr.mxu0 %v576
    %v578 = vand.u32 %v83, 4294901760
    %v579 = vsub.f32 %v83, %v578
    %v580 = vand.u32 %v579, 4294901760
    %v581 = vsub.f32 %v579, %v580
    %v582 = vand.u32 %v581, 4294901760
    %583 = vmatpush1.msra.mxu0 %v582
    %v584 = vand.u32 %v86, 4294901760
    %v585 = vsub.f32 %v86, %v584
    %v586 = vand.u32 %v585, 4294901760
    %v587 = vsub.f32 %v585, %v586
    %v588 = vand.u32 %v587, 4294901760
    %589 = vmatprep.subr.mxu0 %v588
    %v590 = vand.u32 %v85, 4294901760
    %v591 = vsub.f32 %v85, %v590
    %v592 = vand.u32 %v591, 4294901760
    %v593 = vsub.f32 %v591, %v592
    %v594 = vand.u32 %v593, 4294901760
    %595 = vmatpush1.msra.mxu0 %v594
    %v596 = vand.u32 %v88, 4294901760
    %v597 = vsub.f32 %v88, %v596
    %v598 = vand.u32 %v597, 4294901760
    %v599 = vsub.f32 %v597, %v598
    %v600 = vand.u32 %v599, 4294901760
    %601 = vmatprep.subr.mxu0 %v600
    %v602 = vand.u32 %v87, 4294901760
    %v603 = vsub.f32 %v87, %v602
    %v604 = vand.u32 %v603, 4294901760
    %v605 = vsub.f32 %v603, %v604
    %v606 = vand.u32 %v605, 4294901760
    %607 = vmatpush1.msra.mxu0 %v606
    %v608 = vand.u32 %v90, 4294901760
    %v609 = vsub.f32 %v90, %v608
    %v610 = vand.u32 %v609, 4294901760
    %v611 = vsub.f32 %v609, %v610
    %v612 = vand.u32 %v611, 4294901760
    %613 = vmatprep.subr.mxu0 %v612
    %v614 = vand.u32 %v89, 4294901760
    %v615 = vsub.f32 %v89, %v614
    %v616 = vand.u32 %v615, 4294901760
    %v617 = vsub.f32 %v615, %v616
    %v618 = vand.u32 %v617, 4294901760
    %619 = vmatpush1.msra.mxu0 %v618
    %v620 = vand.u32 %v26, 4294901760
    %621 = vmatprep.mubr.f32.mxu0 %v620
    %v622 = vand.u32 %v25, 4294901760
    %623 = vmatmul.mubr.f32.gmra.mrb[0].mxu0 %v622
    %v624 = vpop.f32.mrb[0].mxu0
    %v625 = vadd.f32 %v232, %v624
    %v626 = vpop.f32.mrb[0].mxu0
    %v627 = vadd.f32 %v234, %v626
    %628 = vdwg.mxu0
    %v629 = vand.u32 %v28, 4294901760
    %v630 = vsub.f32 %v28, %v629
    %631 = vmatprep.subr.mxu0 %v630
    %v632 = vand.u32 %v27, 4294901760
    %v633 = vsub.f32 %v27, %v632
    %634 = vmatpush1.msra.mxu0 %v633
    %v635 = vand.u32 %v30, 4294901760
    %v636 = vsub.f32 %v30, %v635
    %637 = vmatprep.subr.mxu0 %v636
    %v638 = vand.u32 %v29, 4294901760
    %v639 = vsub.f32 %v29, %v638
    %640 = vmatpush1.msra.mxu0 %v639
    %v641 = vand.u32 %v32, 4294901760
    %v642 = vsub.f32 %v32, %v641
    %643 = vmatprep.subr.mxu0 %v642
    %v644 = vand.u32 %v31, 4294901760
    %v645 = vsub.f32 %v31, %v644
    %646 = vmatpush1.msra.mxu0 %v645
    %v647 = vand.u32 %v34, 4294901760
    %v648 = vsub.f32 %v34, %v647
    %649 = vmatprep.subr.mxu0 %v648
    %v650 = vand.u32 %v33, 4294901760
    %v651 = vsub.f32 %v33, %v650
    %652 = vmatpush1.msra.mxu0 %v651
    %v653 = vand.u32 %v36, 4294901760
    %v654 = vsub.f32 %v36, %v653
    %655 = vmatprep.subr.mxu0 %v654
    %v656 = vand.u32 %v35, 4294901760
    %v657 = vsub.f32 %v35, %v656
    %658 = vmatpush1.msra.mxu0 %v657
    %v659 = vand.u32 %v38, 4294901760
    %v660 = vsub.f32 %v38, %v659
    %661 = vmatprep.subr.mxu0 %v660
    %v662 = vand.u32 %v37, 4294901760
    %v663 = vsub.f32 %v37, %v662
    %664 = vmatpush1.msra.mxu0 %v663
    %v665 = vand.u32 %v40, 4294901760
    %v666 = vsub.f32 %v40, %v665
    %667 = vmatprep.subr.mxu0 %v666
    %v668 = vand.u32 %v39, 4294901760
    %v669 = vsub.f32 %v39, %v668
    %670 = vmatpush1.msra.mxu0 %v669
    %v671 = vand.u32 %v42, 4294901760
    %v672 = vsub.f32 %v42, %v671
    %673 = vmatprep.subr.mxu0 %v672
    %v674 = vand.u32 %v41, 4294901760
    %v675 = vsub.f32 %v41, %v674
    %676 = vmatpush1.msra.mxu0 %v675
    %v677 = vand.u32 %v44, 4294901760
    %v678 = vsub.f32 %v44, %v677
    %679 = vmatprep.subr.mxu0 %v678
    %v680 = vand.u32 %v43, 4294901760
    %v681 = vsub.f32 %v43, %v680
    %682 = vmatpush1.msra.mxu0 %v681
    %v683 = vand.u32 %v46, 4294901760
    %v684 = vsub.f32 %v46, %v683
    %685 = vmatprep.subr.mxu0 %v684
    %v686 = vand.u32 %v45, 4294901760
    %v687 = vsub.f32 %v45, %v686
    %688 = vmatpush1.msra.mxu0 %v687
    %v689 = vand.u32 %v48, 4294901760
    %v690 = vsub.f32 %v48, %v689
    %691 = vmatprep.subr.mxu0 %v690
    %v692 = vand.u32 %v47, 4294901760
    %v693 = vsub.f32 %v47, %v692
    %694 = vmatpush1.msra.mxu0 %v693
    %v695 = vand.u32 %v50, 4294901760
    %v696 = vsub.f32 %v50, %v695
    %697 = vmatprep.subr.mxu0 %v696
    %v698 = vand.u32 %v49, 4294901760
    %v699 = vsub.f32 %v49, %v698
    %700 = vmatpush1.msra.mxu0 %v699
    %v701 = vand.u32 %v52, 4294901760
    %v702 = vsub.f32 %v52, %v701
    %703 = vmatprep.subr.mxu0 %v702
    %v704 = vand.u32 %v51, 4294901760
    %v705 = vsub.f32 %v51, %v704
    %706 = vmatpush1.msra.mxu0 %v705
    %v707 = vand.u32 %v54, 4294901760
    %v708 = vsub.f32 %v54, %v707
    %709 = vmatprep.subr.mxu0 %v708
    %v710 = vand.u32 %v53, 4294901760
    %v711 = vsub.f32 %v53, %v710
    %712 = vmatpush1.msra.mxu0 %v711
    %v713 = vand.u32 %v56, 4294901760
    %v714 = vsub.f32 %v56, %v713
    %715 = vmatprep.subr.mxu0 %v714
    %v716 = vand.u32 %v55, 4294901760
    %v717 = vsub.f32 %v55, %v716
    %718 = vmatpush1.msra.mxu0 %v717
    %v719 = vand.u32 %v58, 4294901760
    %v720 = vsub.f32 %v58, %v719
    %721 = vmatprep.subr.mxu0 %v720
    %v722 = vand.u32 %v57, 4294901760
    %v723 = vsub.f32 %v57, %v722
    %724 = vmatpush1.msra.mxu0 %v723
    %v725 = vand.u32 %v60, 4294901760
    %v726 = vsub.f32 %v60, %v725
    %727 = vmatprep.subr.mxu0 %v726
    %v728 = vand.u32 %v59, 4294901760
    %v729 = vsub.f32 %v59, %v728
    %730 = vmatpush1.msra.mxu0 %v729
    %v731 = vand.u32 %v62, 4294901760
    %v732 = vsub.f32 %v62, %v731
    %733 = vmatprep.subr.mxu0 %v732
    %v734 = vand.u32 %v61, 4294901760
    %v735 = vsub.f32 %v61, %v734
    %736 = vmatpush1.msra.mxu0 %v735
    %v737 = vand.u32 %v64, 4294901760
    %v738 = vsub.f32 %v64, %v737
    %739 = vmatprep.subr.mxu0 %v738
    %v740 = vand.u32 %v63, 4294901760
    %v741 = vsub.f32 %v63, %v740
    %742 = vmatpush1.msra.mxu0 %v741
    %v743 = vand.u32 %v66, 4294901760
    %v744 = vsub.f32 %v66, %v743
    %745 = vmatprep.subr.mxu0 %v744
    %v746 = vand.u32 %v65, 4294901760
    %v747 = vsub.f32 %v65, %v746
    %748 = vmatpush1.msra.mxu0 %v747
    %v749 = vand.u32 %v68, 4294901760
    %v750 = vsub.f32 %v68, %v749
    %751 = vmatprep.subr.mxu0 %v750
    %v752 = vand.u32 %v67, 4294901760
    %v753 = vsub.f32 %v67, %v752
    %754 = vmatpush1.msra.mxu0 %v753
    %v755 = vand.u32 %v70, 4294901760
    %v756 = vsub.f32 %v70, %v755
    %757 = vmatprep.subr.mxu0 %v756
    %v758 = vand.u32 %v69, 4294901760
    %v759 = vsub.f32 %v69, %v758
    %760 = vmatpush1.msra.mxu0 %v759
    %v761 = vand.u32 %v72, 4294901760
    %v762 = vsub.f32 %v72, %v761
    %763 = vmatprep.subr.mxu0 %v762
    %v764 = vand.u32 %v71, 4294901760
    %v765 = vsub.f32 %v71, %v764
    %766 = vmatpush1.msra.mxu0 %v765
    %v767 = vand.u32 %v74, 4294901760
    %v768 = vsub.f32 %v74, %v767
    %769 = vmatprep.subr.mxu0 %v768
    %v770 = vand.u32 %v73, 4294901760
    %v771 = vsub.f32 %v73, %v770
    %772 = vmatpush1.msra.mxu0 %v771
    %v773 = vand.u32 %v76, 4294901760
    %v774 = vsub.f32 %v76, %v773
    %775 = vmatprep.subr.mxu0 %v774
    %v776 = vand.u32 %v75, 4294901760
    %v777 = vsub.f32 %v75, %v776
    %778 = vmatpush1.msra.mxu0 %v777
    %v779 = vand.u32 %v78, 4294901760
    %v780 = vsub.f32 %v78, %v779
    %781 = vmatprep.subr.mxu0 %v780
    %v782 = vand.u32 %v77, 4294901760
    %v783 = vsub.f32 %v77, %v782
    %784 = vmatpush1.msra.mxu0 %v783
    %v785 = vand.u32 %v80, 4294901760
    %v786 = vsub.f32 %v80, %v785
    %787 = vmatprep.subr.mxu0 %v786
    %v788 = vand.u32 %v79, 4294901760
    %v789 = vsub.f32 %v79, %v788
    %790 = vmatpush1.msra.mxu0 %v789
    %v791 = vand.u32 %v82, 4294901760
    %v792 = vsub.f32 %v82, %v791
    %793 = vmatprep.subr.mxu0 %v792
    %v794 = vand.u32 %v81, 4294901760
    %v795 = vsub.f32 %v81, %v794
    %796 = vmatpush1.msra.mxu0 %v795
    %v797 = vand.u32 %v84, 4294901760
    %v798 = vsub.f32 %v84, %v797
    %799 = vmatprep.subr.mxu0 %v798
    %v800 = vand.u32 %v83, 4294901760
    %v801 = vsub.f32 %v83, %v800
    %802 = vmatpush1.msra.mxu0 %v801
    %v803 = vand.u32 %v86, 4294901760
    %v804 = vsub.f32 %v86, %v803
    %805 = vmatprep.subr.mxu0 %v804
    %v806 = vand.u32 %v85, 4294901760
    %v807 = vsub.f32 %v85, %v806
    %808 = vmatpush1.msra.mxu0 %v807
    %v809 = vand.u32 %v88, 4294901760
    %v810 = vsub.f32 %v88, %v809
    %811 = vmatprep.subr.mxu0 %v810
    %v812 = vand.u32 %v87, 4294901760
    %v813 = vsub.f32 %v87, %v812
    %814 = vmatpush1.msra.mxu0 %v813
    %v815 = vand.u32 %v90, 4294901760
    %v816 = vsub.f32 %v90, %v815
    %817 = vmatprep.subr.mxu0 %v816
    %v818 = vand.u32 %v89, 4294901760
    %v819 = vsub.f32 %v89, %v818
    %820 = vmatpush1.msra.mxu0 %v819
    %v821 = vand.u32 %v26, 4294901760
    %v822 = vsub.f32 %v26, %v821
    %823 = vmatprep.mubr.f32.mxu0 %v822
    %v824 = vand.u32 %v25, 4294901760
    %v825 = vsub.f32 %v25, %v824
    %826 = vmatmul.mubr.f32.gmra.mrb[0].mxu0 %v825
    %v827 = vpop.f32.mrb[0].mxu0
    %v828 = vadd.f32 %v625, %v827
    %v829 = vpop.f32.mrb[0].mxu0
    %v830 = vadd.f32 %v627, %v829
    %831 = vdwg.mxu0
    %v832 = vand.u32 %v28, 4294901760
    %833 = vmatprep.subr.mxu0 %v832
    %v834 = vand.u32 %v27, 4294901760
    %835 = vmatpush1.msra.mxu0 %v834
    %v836 = vand.u32 %v30, 4294901760
    %837 = vmatprep.subr.mxu0 %v836
    %v838 = vand.u32 %v29, 4294901760
    %839 = vmatpush1.msra.mxu0 %v838
    %v840 = vand.u32 %v32, 4294901760
    %841 = vmatprep.subr.mxu0 %v840
    %v842 = vand.u32 %v31, 4294901760
    %843 = vmatpush1.msra.mxu0 %v842
    %v844 = vand.u32 %v34, 4294901760
    %845 = vmatprep.subr.mxu0 %v844
    %v846 = vand.u32 %v33, 4294901760
    %847 = vmatpush1.msra.mxu0 %v846
    %v848 = vand.u32 %v36, 4294901760
    %849 = vmatprep.subr.mxu0 %v848
    %v850 = vand.u32 %v35, 4294901760
    %851 = vmatpush1.msra.mxu0 %v850
    %v852 = vand.u32 %v38, 4294901760
    %853 = vmatprep.subr.mxu0 %v852
    %v854 = vand.u32 %v37, 4294901760
    %855 = vmatpush1.msra.mxu0 %v854
    %v856 = vand.u32 %v40, 4294901760
    %857 = vmatprep.subr.mxu0 %v856
    %v858 = vand.u32 %v39, 4294901760
    %859 = vmatpush1.msra.mxu0 %v858
    %v860 = vand.u32 %v42, 4294901760
    %861 = vmatprep.subr.mxu0 %v860
    %v862 = vand.u32 %v41, 4294901760
    %863 = vmatpush1.msra.mxu0 %v862
    %v864 = vand.u32 %v44, 4294901760
    %865 = vmatprep.subr.mxu0 %v864
    %v866 = vand.u32 %v43, 4294901760
    %867 = vmatpush1.msra.mxu0 %v866
    %v868 = vand.u32 %v46, 4294901760
    %869 = vmatprep.subr.mxu0 %v868
    %v870 = vand.u32 %v45, 4294901760
    %871 = vmatpush1.msra.mxu0 %v870
    %v872 = vand.u32 %v48, 4294901760
    %873 = vmatprep.subr.mxu0 %v872
    %v874 = vand.u32 %v47, 4294901760
    %875 = vmatpush1.msra.mxu0 %v874
    %v876 = vand.u32 %v50, 4294901760
    %877 = vmatprep.subr.mxu0 %v876
    %v878 = vand.u32 %v49, 4294901760
    %879 = vmatpush1.msra.mxu0 %v878
    %v880 = vand.u32 %v52, 4294901760
    %881 = vmatprep.subr.mxu0 %v880
    %v882 = vand.u32 %v51, 4294901760
    %883 = vmatpush1.msra.mxu0 %v882
    %v884 = vand.u32 %v54, 4294901760
    %885 = vmatprep.subr.mxu0 %v884
    %v886 = vand.u32 %v53, 4294901760
    %887 = vmatpush1.msra.mxu0 %v886
    %v888 = vand.u32 %v56, 4294901760
    %889 = vmatprep.subr.mxu0 %v888
    %v890 = vand.u32 %v55, 4294901760
    %891 = vmatpush1.msra.mxu0 %v890
    %v892 = vand.u32 %v58, 4294901760
    %893 = vmatprep.subr.mxu0 %v892
    %v894 = vand.u32 %v57, 4294901760
    %895 = vmatpush1.msra.mxu0 %v894
    %v896 = vand.u32 %v60, 4294901760
    %897 = vmatprep.subr.mxu0 %v896
    %v898 = vand.u32 %v59, 4294901760
    %899 = vmatpush1.msra.mxu0 %v898
    %v900 = vand.u32 %v62, 4294901760
    %901 = vmatprep.subr.mxu0 %v900
    %v902 = vand.u32 %v61, 4294901760
    %903 = vmatpush1.msra.mxu0 %v902
    %v904 = vand.u32 %v64, 4294901760
    %905 = vmatprep.subr.mxu0 %v904
    %v906 = vand.u32 %v63, 4294901760
    %907 = vmatpush1.msra.mxu0 %v906
    %v908 = vand.u32 %v66, 4294901760
    %909 = vmatprep.subr.mxu0 %v908
    %v910 = vand.u32 %v65, 4294901760
    %911 = vmatpush1.msra.mxu0 %v910
    %v912 = vand.u32 %v68, 4294901760
    %913 = vmatprep.subr.mxu0 %v912
    %v914 = vand.u32 %v67, 4294901760
    %915 = vmatpush1.msra.mxu0 %v914
    %v916 = vand.u32 %v70, 4294901760
    %917 = vmatprep.subr.mxu0 %v916
    %v918 = vand.u32 %v69, 4294901760
    %919 = vmatpush1.msra.mxu0 %v918
    %v920 = vand.u32 %v72, 4294901760
    %921 = vmatprep.subr.mxu0 %v920
    %v922 = vand.u32 %v71, 4294901760
    %923 = vmatpush1.msra.mxu0 %v922
    %v924 = vand.u32 %v74, 4294901760
    %925 = vmatprep.subr.mxu0 %v924
    %v926 = vand.u32 %v73, 4294901760
    %927 = vmatpush1.msra.mxu0 %v926
    %v928 = vand.u32 %v76, 4294901760
    %929 = vmatprep.subr.mxu0 %v928
    %v930 = vand.u32 %v75, 4294901760
    %931 = vmatpush1.msra.mxu0 %v930
    %v932 = vand.u32 %v78, 4294901760
    %933 = vmatprep.subr.mxu0 %v932
    %v934 = vand.u32 %v77, 4294901760
    %935 = vmatpush1.msra.mxu0 %v934
    %v936 = vand.u32 %v80, 4294901760
    %937 = vmatprep.subr.mxu0 %v936
    %v938 = vand.u32 %v79, 4294901760
    %939 = vmatpush1.msra.mxu0 %v938
    %v940 = vand.u32 %v82, 4294901760
    %941 = vmatprep.subr.mxu0 %v940
    %v942 = vand.u32 %v81, 4294901760
    %943 = vmatpush1.msra.mxu0 %v942
    %v944 = vand.u32 %v84, 4294901760
    %945 = vmatprep.subr.mxu0 %v944
    %v946 = vand.u32 %v83, 4294901760
    %947 = vmatpush1.msra.mxu0 %v946
    %v948 = vand.u32 %v86, 4294901760
    %949 = vmatprep.subr.mxu0 %v948
    %v950 = vand.u32 %v85, 4294901760
    %951 = vmatpush1.msra.mxu0 %v950
    %v952 = vand.u32 %v88, 4294901760
    %953 = vmatprep.subr.mxu0 %v952
    %v954 = vand.u32 %v87, 4294901760
    %955 = vmatpush1.msra.mxu0 %v954
    %v956 = vand.u32 %v90, 4294901760
    %957 = vmatprep.subr.mxu0 %v956
    %v958 = vand.u32 %v89, 4294901760
    %959 = vmatpush1.msra.mxu0 %v958
    %v960 = vand.u32 %v26, 4294901760
    %v961 = vsub.f32 %v26, %v960
    %v962 = vand.u32 %v961, 4294901760
    %963 = vmatprep.mubr.f32.mxu0 %v962
    %v964 = vand.u32 %v25, 4294901760
    %v965 = vsub.f32 %v25, %v964
    %v966 = vand.u32 %v965, 4294901760
    %967 = vmatmul.mubr.f32.gmra.mrb[0].mxu0 %v966
    %v968 = vpop.f32.mrb[0].mxu0
    %v969 = vadd.f32 %v828, %v968
    %v970 = vpop.f32.mrb[0].mxu0
    %v971 = vadd.f32 %v830, %v970
    %972 = vdwg.mxu0
    %v973 = vand.u32 %v28, 4294901760
    %v974 = vsub.f32 %v28, %v973
    %v975 = vand.u32 %v974, 4294901760
    %976 = vmatprep.subr.mxu0 %v975
    %v977 = vand.u32 %v27, 4294901760
    %v978 = vsub.f32 %v27, %v977
    %v979 = vand.u32 %v978, 4294901760
    %980 = vmatpush1.msra.mxu0 %v979
    %v981 = vand.u32 %v30, 4294901760
    %v982 = vsub.f32 %v30, %v981
    %v983 = vand.u32 %v982, 4294901760
    %984 = vmatprep.subr.mxu0 %v983
    %v985 = vand.u32 %v29, 4294901760
    %v986 = vsub.f32 %v29, %v985
    %v987 = vand.u32 %v986, 4294901760
    %988 = vmatpush1.msra.mxu0 %v987
    %v989 = vand.u32 %v32, 4294901760
    %v990 = vsub.f32 %v32, %v989
    %v991 = vand.u32 %v990, 4294901760
    %992 = vmatprep.subr.mxu0 %v991
    %v993 = vand.u32 %v31, 4294901760
    %v994 = vsub.f32 %v31, %v993
    %v995 = vand.u32 %v994, 4294901760
    %996 = vmatpush1.msra.mxu0 %v995
    %v997 = vand.u32 %v34, 4294901760
    %v998 = vsub.f32 %v34, %v997
    %v999 = vand.u32 %v998, 4294901760
    %1000 = vmatprep.subr.mxu0 %v999
    %v1001 = vand.u32 %v33, 4294901760
    %v1002 = vsub.f32 %v33, %v1001
    %v1003 = vand.u32 %v1002, 4294901760
    %1004 = vmatpush1.msra.mxu0 %v1003
    %v1005 = vand.u32 %v36, 4294901760
    %v1006 = vsub.f32 %v36, %v1005
    %v1007 = vand.u32 %v1006, 4294901760
    %1008 = vmatprep.subr.mxu0 %v1007
    %v1009 = vand.u32 %v35, 4294901760
    %v1010 = vsub.f32 %v35, %v1009
    %v1011 = vand.u32 %v1010, 4294901760
    %1012 = vmatpush1.msra.mxu0 %v1011
    %v1013 = vand.u32 %v38, 4294901760
    %v1014 = vsub.f32 %v38, %v1013
    %v1015 = vand.u32 %v1014, 4294901760
    %1016 = vmatprep.subr.mxu0 %v1015
    %v1017 = vand.u32 %v37, 4294901760
    %v1018 = vsub.f32 %v37, %v1017
    %v1019 = vand.u32 %v1018, 4294901760
    %1020 = vmatpush1.msra.mxu0 %v1019
    %v1021 = vand.u32 %v40, 4294901760
    %v1022 = vsub.f32 %v40, %v1021
    %v1023 = vand.u32 %v1022, 4294901760
    %1024 = vmatprep.subr.mxu0 %v1023
    %v1025 = vand.u32 %v39, 4294901760
    %v1026 = vsub.f32 %v39, %v1025
    %v1027 = vand.u32 %v1026, 4294901760
    %1028 = vmatpush1.msra.mxu0 %v1027
    %v1029 = vand.u32 %v42, 4294901760
    %v1030 = vsub.f32 %v42, %v1029
    %v1031 = vand.u32 %v1030, 4294901760
    %1032 = vmatprep.subr.mxu0 %v1031
    %v1033 = vand.u32 %v41, 4294901760
    %v1034 = vsub.f32 %v41, %v1033
    %v1035 = vand.u32 %v1034, 4294901760
    %1036 = vmatpush1.msra.mxu0 %v1035
    %v1037 = vand.u32 %v44, 4294901760
    %v1038 = vsub.f32 %v44, %v1037
    %v1039 = vand.u32 %v1038, 4294901760
    %1040 = vmatprep.subr.mxu0 %v1039
    %v1041 = vand.u32 %v43, 4294901760
    %v1042 = vsub.f32 %v43, %v1041
    %v1043 = vand.u32 %v1042, 4294901760
    %1044 = vmatpush1.msra.mxu0 %v1043
    %v1045 = vand.u32 %v46, 4294901760
    %v1046 = vsub.f32 %v46, %v1045
    %v1047 = vand.u32 %v1046, 4294901760
    %1048 = vmatprep.subr.mxu0 %v1047
    %v1049 = vand.u32 %v45, 4294901760
    %v1050 = vsub.f32 %v45, %v1049
    %v1051 = vand.u32 %v1050, 4294901760
    %1052 = vmatpush1.msra.mxu0 %v1051
    %v1053 = vand.u32 %v48, 4294901760
    %v1054 = vsub.f32 %v48, %v1053
    %v1055 = vand.u32 %v1054, 4294901760
    %1056 = vmatprep.subr.mxu0 %v1055
    %v1057 = vand.u32 %v47, 4294901760
    %v1058 = vsub.f32 %v47, %v1057
    %v1059 = vand.u32 %v1058, 4294901760
    %1060 = vmatpush1.msra.mxu0 %v1059
    %v1061 = vand.u32 %v50, 4294901760
    %v1062 = vsub.f32 %v50, %v1061
    %v1063 = vand.u32 %v1062, 4294901760
    %1064 = vmatprep.subr.mxu0 %v1063
    %v1065 = vand.u32 %v49, 4294901760
    %v1066 = vsub.f32 %v49, %v1065
    %v1067 = vand.u32 %v1066, 4294901760
    %1068 = vmatpush1.msra.mxu0 %v1067
    %v1069 = vand.u32 %v52, 4294901760
    %v1070 = vsub.f32 %v52, %v1069
    %v1071 = vand.u32 %v1070, 4294901760
    %1072 = vmatprep.subr.mxu0 %v1071
    %v1073 = vand.u32 %v51, 4294901760
    %v1074 = vsub.f32 %v51, %v1073
    %v1075 = vand.u32 %v1074, 4294901760
    %1076 = vmatpush1.msra.mxu0 %v1075
    %v1077 = vand.u32 %v54, 4294901760
    %v1078 = vsub.f32 %v54, %v1077
    %v1079 = vand.u32 %v1078, 4294901760
    %1080 = vmatprep.subr.mxu0 %v1079
    %v1081 = vand.u32 %v53, 4294901760
    %v1082 = vsub.f32 %v53, %v1081
    %v1083 = vand.u32 %v1082, 4294901760
    %1084 = vmatpush1.msra.mxu0 %v1083
    %v1085 = vand.u32 %v56, 4294901760
    %v1086 = vsub.f32 %v56, %v1085
    %v1087 = vand.u32 %v1086, 4294901760
    %1088 = vmatprep.subr.mxu0 %v1087
    %v1089 = vand.u32 %v55, 4294901760
    %v1090 = vsub.f32 %v55, %v1089
    %v1091 = vand.u32 %v1090, 4294901760
    %1092 = vmatpush1.msra.mxu0 %v1091
    %v1093 = vand.u32 %v58, 4294901760
    %v1094 = vsub.f32 %v58, %v1093
    %v1095 = vand.u32 %v1094, 4294901760
    %1096 = vmatprep.subr.mxu0 %v1095
    %v1097 = vand.u32 %v57, 4294901760
    %v1098 = vsub.f32 %v57, %v1097
    %v1099 = vand.u32 %v1098, 4294901760
    %1100 = vmatpush1.msra.mxu0 %v1099
    %v1101 = vand.u32 %v60, 4294901760
    %v1102 = vsub.f32 %v60, %v1101
    %v1103 = vand.u32 %v1102, 4294901760
    %1104 = vmatprep.subr.mxu0 %v1103
    %v1105 = vand.u32 %v59, 4294901760
    %v1106 = vsub.f32 %v59, %v1105
    %v1107 = vand.u32 %v1106, 4294901760
    %1108 = vmatpush1.msra.mxu0 %v1107
    %v1109 = vand.u32 %v62, 4294901760
    %v1110 = vsub.f32 %v62, %v1109
    %v1111 = vand.u32 %v1110, 4294901760
    %1112 = vmatprep.subr.mxu0 %v1111
    %v1113 = vand.u32 %v61, 4294901760
    %v1114 = vsub.f32 %v61, %v1113
    %v1115 = vand.u32 %v1114, 4294901760
    %1116 = vmatpush1.msra.mxu0 %v1115
    %v1117 = vand.u32 %v64, 4294901760
    %v1118 = vsub.f32 %v64, %v1117
    %v1119 = vand.u32 %v1118, 4294901760
    %1120 = vmatprep.subr.mxu0 %v1119
    %v1121 = vand.u32 %v63, 4294901760
    %v1122 = vsub.f32 %v63, %v1121
    %v1123 = vand.u32 %v1122, 4294901760
    %1124 = vmatpush1.msra.mxu0 %v1123
    %v1125 = vand.u32 %v66, 4294901760
    %v1126 = vsub.f32 %v66, %v1125
    %v1127 = vand.u32 %v1126, 4294901760
    %1128 = vmatprep.subr.mxu0 %v1127
    %v1129 = vand.u32 %v65, 4294901760
    %v1130 = vsub.f32 %v65, %v1129
    %v1131 = vand.u32 %v1130, 4294901760
    %1132 = vmatpush1.msra.mxu0 %v1131
    %v1133 = vand.u32 %v68, 4294901760
    %v1134 = vsub.f32 %v68, %v1133
    %v1135 = vand.u32 %v1134, 4294901760
    %1136 = vmatprep.subr.mxu0 %v1135
    %v1137 = vand.u32 %v67, 4294901760
    %v1138 = vsub.f32 %v67, %v1137
    %v1139 = vand.u32 %v1138, 4294901760
    %1140 = vmatpush1.msra.mxu0 %v1139
    %v1141 = vand.u32 %v70, 4294901760
    %v1142 = vsub.f32 %v70, %v1141
    %v1143 = vand.u32 %v1142, 4294901760
    %1144 = vmatprep.subr.mxu0 %v1143
    %v1145 = vand.u32 %v69, 4294901760
    %v1146 = vsub.f32 %v69, %v1145
    %v1147 = vand.u32 %v1146, 4294901760
    %1148 = vmatpush1.msra.mxu0 %v1147
    %v1149 = vand.u32 %v72, 4294901760
    %v1150 = vsub.f32 %v72, %v1149
    %v1151 = vand.u32 %v1150, 4294901760
    %1152 = vmatprep.subr.mxu0 %v1151
    %v1153 = vand.u32 %v71, 4294901760
    %v1154 = vsub.f32 %v71, %v1153
    %v1155 = vand.u32 %v1154, 4294901760
    %1156 = vmatpush1.msra.mxu0 %v1155
    %v1157 = vand.u32 %v74, 4294901760
    %v1158 = vsub.f32 %v74, %v1157
    %v1159 = vand.u32 %v1158, 4294901760
    %1160 = vmatprep.subr.mxu0 %v1159
    %v1161 = vand.u32 %v73, 4294901760
    %v1162 = vsub.f32 %v73, %v1161
    %v1163 = vand.u32 %v1162, 4294901760
    %1164 = vmatpush1.msra.mxu0 %v1163
    %v1165 = vand.u32 %v76, 4294901760
    %v1166 = vsub.f32 %v76, %v1165
    %v1167 = vand.u32 %v1166, 4294901760
    %1168 = vmatprep.subr.mxu0 %v1167
    %v1169 = vand.u32 %v75, 4294901760
    %v1170 = vsub.f32 %v75, %v1169
    %v1171 = vand.u32 %v1170, 4294901760
    %1172 = vmatpush1.msra.mxu0 %v1171
    %v1173 = vand.u32 %v78, 4294901760
    %v1174 = vsub.f32 %v78, %v1173
    %v1175 = vand.u32 %v1174, 4294901760
    %1176 = vmatprep.subr.mxu0 %v1175
    %v1177 = vand.u32 %v77, 4294901760
    %v1178 = vsub.f32 %v77, %v1177
    %v1179 = vand.u32 %v1178, 4294901760
    %1180 = vmatpush1.msra.mxu0 %v1179
    %v1181 = vand.u32 %v80, 4294901760
    %v1182 = vsub.f32 %v80, %v1181
    %v1183 = vand.u32 %v1182, 4294901760
    %1184 = vmatprep.subr.mxu0 %v1183
    %v1185 = vand.u32 %v79, 4294901760
    %v1186 = vsub.f32 %v79, %v1185
    %v1187 = vand.u32 %v1186, 4294901760
    %1188 = vmatpush1.msra.mxu0 %v1187
    %v1189 = vand.u32 %v82, 4294901760
    %v1190 = vsub.f32 %v82, %v1189
    %v1191 = vand.u32 %v1190, 4294901760
    %1192 = vmatprep.subr.mxu0 %v1191
    %v1193 = vand.u32 %v81, 4294901760
    %v1194 = vsub.f32 %v81, %v1193
    %v1195 = vand.u32 %v1194, 4294901760
    %1196 = vmatpush1.msra.mxu0 %v1195
    %v1197 = vand.u32 %v84, 4294901760
    %v1198 = vsub.f32 %v84, %v1197
    %v1199 = vand.u32 %v1198, 4294901760
    %1200 = vmatprep.subr.mxu0 %v1199
    %v1201 = vand.u32 %v83, 4294901760
    %v1202 = vsub.f32 %v83, %v1201
    %v1203 = vand.u32 %v1202, 4294901760
    %1204 = vmatpush1.msra.mxu0 %v1203
    %v1205 = vand.u32 %v86, 4294901760
    %v1206 = vsub.f32 %v86, %v1205
    %v1207 = vand.u32 %v1206, 4294901760
    %1208 = vmatprep.subr.mxu0 %v1207
    %v1209 = vand.u32 %v85, 4294901760
    %v1210 = vsub.f32 %v85, %v1209
    %v1211 = vand.u32 %v1210, 4294901760
    %1212 = vmatpush1.msra.mxu0 %v1211
    %v1213 = vand.u32 %v88, 4294901760
    %v1214 = vsub.f32 %v88, %v1213
    %v1215 = vand.u32 %v1214, 4294901760
    %1216 = vmatprep.subr.mxu0 %v1215
    %v1217 = vand.u32 %v87, 4294901760
    %v1218 = vsub.f32 %v87, %v1217
    %v1219 = vand.u32 %v1218, 4294901760
    %1220 = vmatpush1.msra.mxu0 %v1219
    %v1221 = vand.u32 %v90, 4294901760
    %v1222 = vsub.f32 %v90, %v1221
    %v1223 = vand.u32 %v1222, 4294901760
    %1224 = vmatprep.subr.mxu0 %v1223
    %v1225 = vand.u32 %v89, 4294901760
    %v1226 = vsub.f32 %v89, %v1225
    %v1227 = vand.u32 %v1226, 4294901760
    %1228 = vmatpush1.msra.mxu0 %v1227
    %v1229 = vand.u32 %v26, 4294901760
    %1230 = vmatprep.mubr.f32.mxu0 %v1229
    %v1231 = vand.u32 %v25, 4294901760
    %1232 = vmatmul.mubr.f32.gmra.mrb[0].mxu0 %v1231
    %v1233 = vpop.f32.mrb[0].mxu0
    %v1234 = vadd.f32 %v969, %v1233
    %v1235 = vpop.f32.mrb[0].mxu0
    %v1236 = vadd.f32 %v971, %v1235
    %1237 = vdwg.mxu0
    %v1238 = vand.u32 %v28, 4294901760
    %1239 = vmatprep.subr.mxu0 %v1238
    %v1240 = vand.u32 %v27, 4294901760
    %1241 = vmatpush1.msra.mxu0 %v1240
    %v1242 = vand.u32 %v30, 4294901760
    %1243 = vmatprep.subr.mxu0 %v1242
    %v1244 = vand.u32 %v29, 4294901760
    %1245 = vmatpush1.msra.mxu0 %v1244
    %v1246 = vand.u32 %v32, 4294901760
    %1247 = vmatprep.subr.mxu0 %v1246
    %v1248 = vand.u32 %v31, 4294901760
    %1249 = vmatpush1.msra.mxu0 %v1248
    %v1250 = vand.u32 %v34, 4294901760
    %1251 = vmatprep.subr.mxu0 %v1250
    %v1252 = vand.u32 %v33, 4294901760
    %1253 = vmatpush1.msra.mxu0 %v1252
    %v1254 = vand.u32 %v36, 4294901760
    %1255 = vmatprep.subr.mxu0 %v1254
    %v1256 = vand.u32 %v35, 4294901760
    %1257 = vmatpush1.msra.mxu0 %v1256
    %v1258 = vand.u32 %v38, 4294901760
    %1259 = vmatprep.subr.mxu0 %v1258
    %v1260 = vand.u32 %v37, 4294901760
    %1261 = vmatpush1.msra.mxu0 %v1260
    %v1262 = vand.u32 %v40, 4294901760
    %1263 = vmatprep.subr.mxu0 %v1262
    %v1264 = vand.u32 %v39, 4294901760
    %1265 = vmatpush1.msra.mxu0 %v1264
    %v1266 = vand.u32 %v42, 4294901760
    %1267 = vmatprep.subr.mxu0 %v1266
    %v1268 = vand.u32 %v41, 4294901760
    %1269 = vmatpush1.msra.mxu0 %v1268
    %v1270 = vand.u32 %v44, 4294901760
    %1271 = vmatprep.subr.mxu0 %v1270
    %v1272 = vand.u32 %v43, 4294901760
    %1273 = vmatpush1.msra.mxu0 %v1272
    %v1274 = vand.u32 %v46, 4294901760
    %1275 = vmatprep.subr.mxu0 %v1274
    %v1276 = vand.u32 %v45, 4294901760
    %1277 = vmatpush1.msra.mxu0 %v1276
    %v1278 = vand.u32 %v48, 4294901760
    %1279 = vmatprep.subr.mxu0 %v1278
    %v1280 = vand.u32 %v47, 4294901760
    %1281 = vmatpush1.msra.mxu0 %v1280
    %v1282 = vand.u32 %v50, 4294901760
    %1283 = vmatprep.subr.mxu0 %v1282
    %v1284 = vand.u32 %v49, 4294901760
    %1285 = vmatpush1.msra.mxu0 %v1284
    %v1286 = vand.u32 %v52, 4294901760
    %1287 = vmatprep.subr.mxu0 %v1286
    %v1288 = vand.u32 %v51, 4294901760
    %1289 = vmatpush1.msra.mxu0 %v1288
    %v1290 = vand.u32 %v54, 4294901760
    %1291 = vmatprep.subr.mxu0 %v1290
    %v1292 = vand.u32 %v53, 4294901760
    %1293 = vmatpush1.msra.mxu0 %v1292
    %v1294 = vand.u32 %v56, 4294901760
    %1295 = vmatprep.subr.mxu0 %v1294
    %v1296 = vand.u32 %v55, 4294901760
    %1297 = vmatpush1.msra.mxu0 %v1296
    %v1298 = vand.u32 %v58, 4294901760
    %1299 = vmatprep.subr.mxu0 %v1298
    %v1300 = vand.u32 %v57, 4294901760
    %1301 = vmatpush1.msra.mxu0 %v1300
    %v1302 = vand.u32 %v60, 4294901760
    %1303 = vmatprep.subr.mxu0 %v1302
    %v1304 = vand.u32 %v59, 4294901760
    %1305 = vmatpush1.msra.mxu0 %v1304
    %v1306 = vand.u32 %v62, 4294901760
    %1307 = vmatprep.subr.mxu0 %v1306
    %v1308 = vand.u32 %v61, 4294901760
    %1309 = vmatpush1.msra.mxu0 %v1308
    %v1310 = vand.u32 %v64, 4294901760
    %1311 = vmatprep.subr.mxu0 %v1310
    %v1312 = vand.u32 %v63, 4294901760
    %1313 = vmatpush1.msra.mxu0 %v1312
    %v1314 = vand.u32 %v66, 4294901760
    %1315 = vmatprep.subr.mxu0 %v1314
    %v1316 = vand.u32 %v65, 4294901760
    %1317 = vmatpush1.msra.mxu0 %v1316
    %v1318 = vand.u32 %v68, 4294901760
    %1319 = vmatprep.subr.mxu0 %v1318
    %v1320 = vand.u32 %v67, 4294901760
    %1321 = vmatpush1.msra.mxu0 %v1320
    %v1322 = vand.u32 %v70, 4294901760
    %1323 = vmatprep.subr.mxu0 %v1322
    %v1324 = vand.u32 %v69, 4294901760
    %1325 = vmatpush1.msra.mxu0 %v1324
    %v1326 = vand.u32 %v72, 4294901760
    %1327 = vmatprep.subr.mxu0 %v1326
    %v1328 = vand.u32 %v71, 4294901760
    %1329 = vmatpush1.msra.mxu0 %v1328
    %v1330 = vand.u32 %v74, 4294901760
    %1331 = vmatprep.subr.mxu0 %v1330
    %v1332 = vand.u32 %v73, 4294901760
    %1333 = vmatpush1.msra.mxu0 %v1332
    %v1334 = vand.u32 %v76, 4294901760
    %1335 = vmatprep.subr.mxu0 %v1334
    %v1336 = vand.u32 %v75, 4294901760
    %1337 = vmatpush1.msra.mxu0 %v1336
    %v1338 = vand.u32 %v78, 4294901760
    %1339 = vmatprep.subr.mxu0 %v1338
    %v1340 = vand.u32 %v77, 4294901760
    %1341 = vmatpush1.msra.mxu0 %v1340
    %v1342 = vand.u32 %v80, 4294901760
    %1343 = vmatprep.subr.mxu0 %v1342
    %v1344 = vand.u32 %v79, 4294901760
    %1345 = vmatpush1.msra.mxu0 %v1344
    %v1346 = vand.u32 %v82, 4294901760
    %1347 = vmatprep.subr.mxu0 %v1346
    %v1348 = vand.u32 %v81, 4294901760
    %1349 = vmatpush1.msra.mxu0 %v1348
    %v1350 = vand.u32 %v84, 4294901760
    %1351 = vmatprep.subr.mxu0 %v1350
    %v1352 = vand.u32 %v83, 4294901760
    %1353 = vmatpush1.msra.mxu0 %v1352
    %v1354 = vand.u32 %v86, 4294901760
    %1355 = vmatprep.subr.mxu0 %v1354
    %v1356 = vand.u32 %v85, 4294901760
    %1357 = vmatpush1.msra.mxu0 %v1356
    %v1358 = vand.u32 %v88, 4294901760
    %1359 = vmatprep.subr.mxu0 %v1358
    %v1360 = vand.u32 %v87, 4294901760
    %1361 = vmatpush1.msra.mxu0 %v1360
    %v1362 = vand.u32 %v90, 4294901760
    %1363 = vmatprep.subr.mxu0 %v1362
    %v1364 = vand.u32 %v89, 4294901760
    %1365 = vmatpush1.msra.mxu0 %v1364
    %v1366 = vand.u32 %v26, 4294901760
    %1367 = vmatprep.mubr.f32.mxu0 %v1366
    %v1368 = vand.u32 %v25, 4294901760
    %1369 = vmatmul.mubr.f32.gmra.mrb[0].mxu0 %v1368
    %v1370 = vpop.f32.mrb[0].mxu0
    %v1371 = vadd.f32 %v1234, %v1370
    %v1372 = vpop.f32.mrb[0].mxu0
    %v1373 = vadd.f32 %v1236, %v1372
    %1374 = vdwg.mxu0
    %1375 = vst [vmem:[%s2] sm:$0xff] %v1371
    %1376 = vst [vmem:[%s2 + $0x8] sm:$0xff] %v1373
    // Predicated region
    $region14: #{_forward_impl.1} parent=1 // pred_check
      _
    $region15: #{_forward_impl.1} parent=1 // pred_check_branch
      %1378 = sbr.rel (0) target = $region17
    $region16: #{_forward_impl.1} parent=1 // pred_region
      _
    $region17: #{_forward_impl.1} parent=1 // pred_fallthru
      _
    // Predicated region
    $region18: #{_forward_impl.1} parent=1 // pred_check
      _
    $region19: #{_forward_impl.1} parent=1 // pred_check_branch
      %1380 = sbr.rel (0) target = $region21
    $region20: #{_forward_impl.1} parent=1 // pred_region
      _
    $region21: #{_forward_impl.1} parent=1 // pred_fallthru
      _
    %1381 = vsyncpa [#allocation3], 1

</llo_original>
